<compile_context>
chip_gen: v5e
topology: v5e:2x2
jax: 0.10.0
libtpu: 0.0.40
codegen_flags: <defaults>
</compile_context>

<pallas_src>
import jax
import jax.numpy as jnp
import numpy as np
from jax.experimental import pallas as pl
from jax.experimental.pallas import tpu as pltpu


def _activation_dtype():
    """bf16 tanh/activations on v6e/v7x (bf16 VPU/EUP); f32 on v5e and older."""
    try:
        kind = jax.devices()[0].device_kind.lower()
    except Exception:
        return jnp.float32
    if any(g in kind for g in ("v2", "v3", "v4", "v5")):
        return jnp.float32
    return jnp.bfloat16


def _make_mlp_kernel(n_layers: int, act_dtype, mxu_dtype):
    """Fused MLP forward over one batch tile.

    Kernel signature: (x_ref, W0..W{L-1}, b0..b{L-1}, o_ref)
    Hidden layers: tanh(W @ h + b); final layer: W @ h + b (no activation).
    Weights are bf16 (resident); MXU accumulates in f32; bias add is f32;
    tanh / inter-layer activations run in `act_dtype` (bf16 on v6e/v7x).
    """

    def kernel(*refs):
        x_ref = refs[0]
        w_refs = refs[1:1 + n_layers]
        b_refs = refs[1 + n_layers:1 + 2 * n_layers]
        o_ref = refs[-1]

        h = x_ref[...]                                     # (features, TILE_B) f32
        z = h
        for i in range(n_layers):
            # bf16 x bf16 on the MXU, f32 accumulation; (out, 1) bias
            # broadcasts across the lane (batch) axis on the VPU.
            z = jnp.dot(w_refs[i][...], h.astype(mxu_dtype),
                        preferred_element_type=jnp.float32) + b_refs[i][...]
            if i < n_layers - 1:
                # act_dtype == f32  -> astype is a no-op (v5e path).
                # act_dtype == bf16 -> bf16 tanh; next matmul consumes h as-is.
                h = jnp.tanh(z.astype(act_dtype))
        o_ref[...] = z.astype(o_ref.dtype)

    return kernel


def _choose_tile_b(batch: int, max_tile_b: int) -> int:
    """Lane-dense tile: 128-multiple, aim for ~2 tiles (v7x dual-TC), cap size."""
    lane_groups = pl.cdiv(batch, 128)
    if lane_groups <= 1:
        return 128
    groups_per_tile = min(pl.cdiv(lane_groups, 2), max(max_tile_b // 128, 1))
    return max(groups_per_tile, 1) * 128


def nn_forward_pallas(x, Ws, bs, *, tile_b=None, max_tile_b: int = 4096):
    """Pallas equivalent of NNWithG.forward.

    x:  (layers[0], batch)     float32
    Ws: list of (layers[i+1], layers[i]) float32
    bs: list of (layers[i+1], 1)         float32
    returns (layers[-1], batch) float32
    """
    n_layers = len(Ws)
    in_features, batch = x.shape
    out_features = Ws[-1].shape[0]
    widths = [w.shape[0] for w in Ws]

    if tile_b is None:
        tile_b = _choose_tile_b(batch, max_tile_b)
    tile_b = max(128, (int(tile_b) // 128) * 128)
    # Ragged tail handled by Pallas partial-last-block masking (no pad/slice).
    n_tiles = pl.cdiv(batch, tile_b)

    mxu_dtype = jnp.bfloat16
    act_dtype = _activation_dtype()

    # bf16 weights: resident in VMEM, feed the MXU at its native rate.
    Ws_lo = [w.astype(mxu_dtype) for w in Ws]
    # Biases stay (out, 1) f32; lane broadcast happens in-kernel.
    bs_f32 = [b.astype(jnp.float32) for b in bs]

    kernel = _make_mlp_kernel(n_layers, act_dtype, mxu_dtype)

    # x / out stream over the batch grid; weights & biases are resident
    # (constant index_map -> DMA'd once, kept in VMEM across all tiles).
    x_spec = pl.BlockSpec((in_features, tile_b), lambda i: (0, i))
    w_specs = [pl.BlockSpec(w.shape, lambda i: (0, 0)) for w in Ws_lo]
    b_specs = [pl.BlockSpec(b.shape, lambda i: (0, 0)) for b in bs_f32]
    out_spec = pl.BlockSpec((out_features, tile_b), lambda i: (0, i))

    # Explicit VMEM budget: double-buffered x/out streams + resident params
    # + a few layer-width temporaries, with 2x slack; clamp to [16 MiB, 64 MiB]
    # so it is valid on v5e/v6e (128 MiB physical) and v7x (64 MiB physical).
    bytes_f32 = 4
    stream_bytes = 2 * (in_features + out_features) * tile_b * bytes_f32
    resident_bytes = 2 * (sum(w.size for w in Ws_lo) * 2
                          + sum(b.size for b in bs_f32) * bytes_f32)
    temp_bytes = 4 * max(widths + [in_features]) * tile_b * bytes_f32
    vmem_limit = int(min(max(2 * (stream_bytes + resident_bytes + temp_bytes),
                             16 << 20), 64 << 20))

    flops = 2 * batch * sum(w.shape[0] * w.shape[1] for w in Ws)
    transcendentals = batch * sum(w.shape[0] for w in Ws[:-1])
    bytes_accessed = (x.size * bytes_f32
                      + out_features * batch * bytes_f32
                      + sum(w.size for w in Ws_lo) * 2
                      + sum(b.size for b in bs_f32) * bytes_f32)

    out = pl.pallas_call(
        kernel,
        out_shape=jax.ShapeDtypeStruct((out_features, batch), jnp.float32),
        grid=(n_tiles,),
        in_specs=[x_spec] + w_specs + b_specs,
        out_specs=out_spec,
        compiler_params=pltpu.CompilerParams(
            dimension_semantics=("parallel",),
            vmem_limit_bytes=vmem_limit),
        cost_estimate=pl.CostEstimate(
            flops=flops,
            transcendentals=transcendentals,
            bytes_accessed=bytes_accessed),
    )(x, *Ws_lo, *bs_f32)

    return out


def nn_forward_ref(x, Ws, bs):
    """Plain-JAX reference mirroring the PyTorch forward."""
    h = x
    for i in range(len(Ws) - 1):
        h = jnp.tanh(Ws[i] @ h + bs[i])
    return Ws[-1] @ h + bs[-1]


def init_params(key, layers):
    """Deterministic init matching NNWithG.__init__ (Xavier-style normal)."""
    Ws, bs = [], []
    for i in range(len(layers) - 1):
        in_size, out_size = layers[i], layers[i + 1]
        std_dev = float(np.sqrt(2.0 / (in_size + out_size)))
        key, kw, kb = jax.random.split(key, 3)
        Ws.append(std_dev * jax.random.normal(kw, (out_size, in_size), jnp.float32))
        bs.append(std_dev * jax.random.normal(kb, (out_size, 1), jnp.float32))
    return Ws, bs


if __name__ == "__main__":
    # Small shapes consistent with the module: narrow layers, batch of column
    # samples. batch=1000 exercises the 2-tile grid (v7x dual-TC split) and
    # the ragged masked-tail path (1000 not a multiple of 512/128).
    layers = [16, 32, 32, 8]
    batch = 1000

    key = jax.random.PRNGKey(0)
    key, kx = jax.random.split(key)
    x = jax.random.normal(kx, (layers[0], batch), jnp.float32)
    Ws, bs = init_params(key, layers)

    out = jax.block_until_ready(nn_forward_pallas(x, Ws, bs))
    assert out.shape == (layers[-1], batch)

    ref = nn_forward_ref(x, Ws, bs)
    # bf16 matmul inputs (+ bf16 activations on v6e/v7x) with f32 accumulation
    # -> loosened tolerance vs. the pure-f32 reference.
    np.testing.assert_allclose(np.asarray(out), np.asarray(ref),
                               rtol=5e-2, atol=5e-2)

    # TODO(synk): get_g_parameters / compute_g_factor are not part of forward();
    # only the forward MLP hot path is implemented as a Pallas kernel.
    print("KERNEL_OK")
</pallas_src>

<mosaic_0001>
module attributes {stable_mosaic.version = 11 : i64} {
  func.func @kernel(%arg0: i32, %arg1: memref<16x512xf32, #tpu.memory_space<vmem>>, %arg2: memref<32x16xbf16, #tpu.memory_space<vmem>>, %arg3: memref<32x32xbf16, #tpu.memory_space<vmem>>, %arg4: memref<8x32xbf16, #tpu.memory_space<vmem>>, %arg5: memref<32x1xf32, #tpu.memory_space<vmem>>, %arg6: memref<32x1xf32, #tpu.memory_space<vmem>>, %arg7: memref<8x1xf32, #tpu.memory_space<vmem>>, %arg8: memref<8x512xf32, #tpu.memory_space<vmem>>) attributes {dimension_semantics = [#tpu.dimension_semantics<parallel>], iteration_bounds = array<i64: 2>, scalar_prefetch = 0 : i64, scratch_operands = 0 : i64, tpu.core_type = #tpu.core_type<tc>, window_params = [{transform_indices = @transform_0, window_bounds = array<i64: 16, 512>}, {pipeline_mode = #tpu.pipeline_mode<synchronous>, transform_indices = @transform_1, window_bounds = array<i64: 32, 16>}, {pipeline_mode = #tpu.pipeline_mode<synchronous>, transform_indices = @transform_2, window_bounds = array<i64: 32, 32>}, {pipeline_mode = #tpu.pipeline_mode<synchronous>, transform_indices = @transform_3, window_bounds = array<i64: 8, 32>}, {pipeline_mode = #tpu.pipeline_mode<synchronous>, transform_indices = @transform_4, window_bounds = array<i64: 32, 1>}, {pipeline_mode = #tpu.pipeline_mode<synchronous>, transform_indices = @transform_5, window_bounds = array<i64: 32, 1>}, {pipeline_mode = #tpu.pipeline_mode<synchronous>, transform_indices = @transform_6, window_bounds = array<i64: 8, 1>}, {transform_indices = @transform_7, window_bounds = array<i64: 8, 512>}]} {
    %c0 = arith.constant 0 : index
    %c0_0 = arith.constant 0 : index
    %0 = vector.load %arg1[%c0, %c0_0] : memref<16x512xf32, #tpu.memory_space<vmem>>, vector<16x512xf32>
    %c0_1 = arith.constant 0 : index
    %c0_2 = arith.constant 0 : index
    %1 = vector.load %arg2[%c0_1, %c0_2] : memref<32x16xbf16, #tpu.memory_space<vmem>>, vector<32x16xbf16>
    %2 = arith.truncf %0 : vector<16x512xf32> to vector<16x512xbf16>
    %cst = arith.constant dense<0.000000e+00> : vector<32x512xf32>
    %3 = tpu.matmul %1, %2, %cst {dimension_numbers = #tpu.dot_dimension_numbers<[1], [0], [0], [1], [0, 0, 1, 1], [], []>} : vector<32x16xbf16>, vector<16x512xbf16>, vector<32x512xf32> -> vector<32x512xf32>
    %c0_3 = arith.constant 0 : index
    %c0_4 = arith.constant 0 : index
    %4 = vector.load %arg5[%c0_3, %c0_4] : memref<32x1xf32, #tpu.memory_space<vmem>>, vector<32x1xf32>
    %5 = vector.broadcast %4 : vector<32x1xf32> to vector<32x512xf32>
    %6 = arith.addf %3, %5 : vector<32x512xf32>
    %7 = arith.truncf %6 : vector<32x512xf32> to vector<32x512xbf16>
    %8 = math.tanh %7 : vector<32x512xbf16>
    %c0_5 = arith.constant 0 : index
    %c0_6 = arith.constant 0 : index
    %9 = vector.load %arg3[%c0_5, %c0_6] : memref<32x32xbf16, #tpu.memory_space<vmem>>, vector<32x32xbf16>
    %cst_7 = arith.constant dense<0.000000e+00> : vector<32x512xf32>
    %10 = tpu.matmul %9, %8, %cst_7 {dimension_numbers = #tpu.dot_dimension_numbers<[1], [0], [0], [1], [0, 0, 1, 1], [], []>} : vector<32x32xbf16>, vector<32x512xbf16>, vector<32x512xf32> -> vector<32x512xf32>
    %c0_8 = arith.constant 0 : index
    %c0_9 = arith.constant 0 : index
    %11 = vector.load %arg6[%c0_8, %c0_9] : memref<32x1xf32, #tpu.memory_space<vmem>>, vector<32x1xf32>
    %12 = vector.broadcast %11 : vector<32x1xf32> to vector<32x512xf32>
    %13 = arith.addf %10, %12 : vector<32x512xf32>
    %14 = arith.truncf %13 : vector<32x512xf32> to vector<32x512xbf16>
    %15 = math.tanh %14 : vector<32x512xbf16>
    %c0_10 = arith.constant 0 : index
    %c0_11 = arith.constant 0 : index
    %16 = vector.load %arg4[%c0_10, %c0_11] : memref<8x32xbf16, #tpu.memory_space<vmem>>, vector<8x32xbf16>
    %cst_12 = arith.constant dense<0.000000e+00> : vector<8x512xf32>
    %17 = tpu.matmul %16, %15, %cst_12 {dimension_numbers = #tpu.dot_dimension_numbers<[1], [0], [0], [1], [0, 0, 1, 1], [], []>} : vector<8x32xbf16>, vector<32x512xbf16>, vector<8x512xf32> -> vector<8x512xf32>
    %c0_13 = arith.constant 0 : index
    %c0_14 = arith.constant 0 : index
    %18 = vector.load %arg7[%c0_13, %c0_14] : memref<8x1xf32, #tpu.memory_space<vmem>>, vector<8x1xf32>
    %19 = vector.broadcast %18 : vector<8x1xf32> to vector<8x512xf32>
    %20 = arith.addf %17, %19 : vector<8x512xf32>
    %c0_15 = arith.constant 0 : index
    %c0_16 = arith.constant 0 : index
    %21 = vector.load %arg8[%c0_15, %c0_16] : memref<8x512xf32, #tpu.memory_space<vmem>>, vector<8x512xf32>
    tpu.vector_store %arg8[%c0_15, %c0_16], %20 {strides = array<i32>} : memref<8x512xf32, #tpu.memory_space<vmem>>, vector<8x512xf32>,
    return
  }
  func.func @transform_0(%arg0: i32) -> (i32, i32) {
    %c0_i32 = arith.constant 0 : i32
    %c0_i32_0 = arith.constant 0 : i32
    return %c0_i32, %arg0 : i32, i32
  }
  func.func @transform_1(%arg0: i32) -> (i32, i32) {
    %c0_i32 = arith.constant 0 : i32
    %c0_i32_0 = arith.constant 0 : i32
    %c0_i32_1 = arith.constant 0 : i32
    return %c0_i32, %c0_i32_0 : i32, i32
  }
  func.func @transform_2(%arg0: i32) -> (i32, i32) {
    %c0_i32 = arith.constant 0 : i32
    %c0_i32_0 = arith.constant 0 : i32
    %c0_i32_1 = arith.constant 0 : i32
    return %c0_i32, %c0_i32_0 : i32, i32
  }
  func.func @transform_3(%arg0: i32) -> (i32, i32) {
    %c0_i32 = arith.constant 0 : i32
    %c0_i32_0 = arith.constant 0 : i32
    %c0_i32_1 = arith.constant 0 : i32
    return %c0_i32, %c0_i32_0 : i32, i32
  }
  func.func @transform_4(%arg0: i32) -> (i32, i32) {
    %c0_i32 = arith.constant 0 : i32
    %c0_i32_0 = arith.constant 0 : i32
    %c0_i32_1 = arith.constant 0 : i32
    return %c0_i32, %c0_i32_0 : i32, i32
  }
  func.func @transform_5(%arg0: i32) -> (i32, i32) {
    %c0_i32 = arith.constant 0 : i32
    %c0_i32_0 = arith.constant 0 : i32
    %c0_i32_1 = arith.constant 0 : i32
    return %c0_i32, %c0_i32_0 : i32, i32
  }
  func.func @transform_6(%arg0: i32) -> (i32, i32) {
    %c0_i32 = arith.constant 0 : i32
    %c0_i32_0 = arith.constant 0 : i32
    %c0_i32_1 = arith.constant 0 : i32
    return %c0_i32, %c0_i32_0 : i32, i32
  }
  func.func @transform_7(%arg0: i32) -> (i32, i32) {
    %c0_i32 = arith.constant 0 : i32
    %c0_i32_0 = arith.constant 0 : i32
    return %c0_i32, %arg0 : i32, i32
  }
}

</mosaic_0001>

<llo_original>
// kernel: tpu_custom_call.1
$region0: #{tpu_custom_call.1}
  #allocation0 [shape = 'u32[]', space=smem, size = 0x4, offset = 0x4, fixed_abs, tag = 'smem constant byte address 0x4 - core index']
  #allocation1 [shape = 'u32[72,128]{1,0:T(1,128)}', space=vmem, size = 0x9000, scoped, tag = 'internal scratch']
  %s0 = inlined_call_operand.hbm [shape: f32[16,1000], index: 0, kind: input, shape index: {}]
  %s1 = inlined_call_operand.vmem [shape: bf16[32,16], index: 1, kind: input, shape index: {}]
  %s2 = inlined_call_operand.vmem [shape: bf16[32,32], index: 2, kind: input, shape index: {}]
  %s3 = inlined_call_operand.vmem [shape: bf16[8,32], index: 3, kind: input, shape index: {}]
  %s4 = inlined_call_operand.vmem [shape: f32[32,1], index: 4, kind: input, shape index: {}]
  %s5 = inlined_call_operand.vmem [shape: f32[32,1], index: 5, kind: input, shape index: {}]
  %s6 = inlined_call_operand.vmem [shape: f32[8,1], index: 6, kind: input, shape index: {}]
  %s7 = inlined_call_operand.hbm [shape: f32[8,1000], index: 7, kind: output, shape index: {}]
  %s8 = sld [smem:[#allocation0]]
  $region65: #{tpu_custom_call.1} parent=0
    _
  %s10 = ssub.s32 1, %s8
  %s11 = scalar_select 0, %s10, %s8
  $region1: #{tpu_custom_call.1} parent=0
    #allocation2 [shape = 'u8[65536]{0}', space=vmem, size = 0x10000, scoped, tag = 'input window, operand 0']
    #allocation3 [shape = 's32[2]{0}', space=sflag, size = 0x8, scoped, tag = 'scoped memory for tpu_custom_call.1']
    #allocation4 [shape = 's32[2]{0}', space=sflag, size = 0x8, scoped, tag = 'scoped memory for tpu_custom_call.1']
    #allocation5 [shape = 'u8[32768]{0}', space=vmem, size = 0x8000, scoped, tag = 'output window, operand 0']
    %12 = vsyncpa [#allocation3], 0
    %s13 = scalar_lea.sflag [#allocation3], 1
    %14 = vsyncpa %s13, 0
    %15 = vsyncpa [#allocation4], 0
    %s16 = scalar_lea.sflag [#allocation4], 1
    %17 = vsyncpa %s16, 0
    loop: start=0, step=1, limit=4
    $region2: #{tpu_custom_call.1} parent=1 // loop_pre_header
      _
    $region3: #{tpu_custom_call.1} parent=1 // loop_header
      %s19 = sphi 0, %s23
      %p20 = scmp.ge.s32.totalorder %s19, 4
      %s29 = sphi 0, %s31
      %s32 = sphi 0, %s29
      %s33 = sphi 0, %s32
      %s49 = sphi 0, %s33
      %s53 = sphi 0, %s53
      %s55 = sphi 0, %s53
      %s56 = sphi 0, %s55
      %s70 = sphi 0, %s56
      %s74 = sphi 0, %s74
      %s76 = sphi 0, %s74
      %s77 = sphi 0, %s76
      %s91 = sphi 0, %s77
      %s95 = sphi 0, %s95
      %s97 = sphi 0, %s95
      %s98 = sphi 0, %s97
      %s112 = sphi 0, %s98
      %s116 = sphi 0, %s116
      %s118 = sphi 0, %s116
      %s119 = sphi 0, %s118
      %s133 = sphi 0, %s119
      %s137 = sphi 0, %s137
      %s139 = sphi 0, %s137
      %s140 = sphi 0, %s139
      %s154 = sphi 0, %s140
      %s158 = sphi 0, %s158
      %s160 = sphi 0, %s158
      %s161 = sphi 0, %s160
      %s175 = sphi 0, %s161
      %s181 = sphi 0, %s183
      %s184 = sphi 0, %s181
      %s185 = sphi 0, %s184
      %s201 = sphi 0, %s185
    $region4: #{tpu_custom_call.1} parent=1 // loop_header_branch
      %22 = sbr.rel (%p20) target = $region8
    $region5: #{tpu_custom_call.1} parent=1 // loop_body
      %s24 = ssub.s32 %s19, 1
      %s25 = ssub.s32 %s19, 2
      %s26 = sadd.s32 %s19, 1
      %s27 = ssub.s32 %s19, %s26
      %p28 = scmp.eq.s32.totalorder %s27, 0
      %s30 = sadd.s32 %s29, 1
      %s31 = scalar_select %p28, %s29, %s30
      %p34 = pneg %p28
      %p35 = scmp.eq.s32.totalorder %s19, 1
      %p36 = por %p34, %p35
      %p37 = scmp.ne.s32.totalorder %s29, %s32
      %p38 = scmp.eq.s32.totalorder %s19, 0
      %p39 = por %p37, %p38
      %p40 = scmp.ne.s32.totalorder %s29, %s32
      %p41 = scmp.eq.s32.totalorder %s24, 1
      %p42 = por %p40, %p41
      %p43 = scmp.ne.s32.totalorder %s32, %s33
      %p44 = scmp.eq.s32.totalorder %s24, 0
      %p45 = por %p43, %p44
      %p46 = scmp.ne.s32.totalorder %s32, %s33
      %p47 = scmp.eq.s32.totalorder %s25, 1
      %p48 = por %p46, %p47
      %p50 = scmp.ne.s32.totalorder %s33, %s49
      %p51 = scmp.eq.s32.totalorder %s25, 0
      %p52 = por %p50, %p51
      %s54 = sadd.s32 %s53, 1
      %p57 = scmp.eq.s32.totalorder %s19, 1
      %p58 = scmp.ne.s32.totalorder %s53, %s55
      %p59 = scmp.eq.s32.totalorder %s19, 0
      %p60 = por %p58, %p59
      %p61 = scmp.ne.s32.totalorder %s53, %s55
      %p62 = scmp.eq.s32.totalorder %s24, 1
      %p63 = por %p61, %p62
      %p64 = scmp.ne.s32.totalorder %s55, %s56
      %p65 = scmp.eq.s32.totalorder %s24, 0
      %p66 = por %p64, %p65
      %p67 = scmp.ne.s32.totalorder %s55, %s56
      %p68 = scmp.eq.s32.totalorder %s25, 1
      %p69 = por %p67, %p68
      %p71 = scmp.ne.s32.totalorder %s56, %s70
      %p72 = scmp.eq.s32.totalorder %s25, 0
      %p73 = por %p71, %p72
      %s75 = sadd.s32 %s74, 1
      %p78 = scmp.eq.s32.totalorder %s19, 1
      %p79 = scmp.ne.s32.totalorder %s74, %s76
      %p80 = scmp.eq.s32.totalorder %s19, 0
      %p81 = por %p79, %p80
      %p82 = scmp.ne.s32.totalorder %s74, %s76
      %p83 = scmp.eq.s32.totalorder %s24, 1
      %p84 = por %p82, %p83
      %p85 = scmp.ne.s32.totalorder %s76, %s77
      %p86 = scmp.eq.s32.totalorder %s24, 0
      %p87 = por %p85, %p86
      %p88 = scmp.ne.s32.totalorder %s76, %s77
      %p89 = scmp.eq.s32.totalorder %s25, 1
      %p90 = por %p88, %p89
      %p92 = scmp.ne.s32.totalorder %s77, %s91
      %p93 = scmp.eq.s32.totalorder %s25, 0
      %p94 = por %p92, %p93
      %s96 = sadd.s32 %s95, 1
      %p99 = scmp.eq.s32.totalorder %s19, 1
      %p100 = scmp.ne.s32.totalorder %s95, %s97
      %p101 = scmp.eq.s32.totalorder %s19, 0
      %p102 = por %p100, %p101
      %p103 = scmp.ne.s32.totalorder %s95, %s97
      %p104 = scmp.eq.s32.totalorder %s24, 1
      %p105 = por %p103, %p104
      %p106 = scmp.ne.s32.totalorder %s97, %s98
      %p107 = scmp.eq.s32.totalorder %s24, 0
      %p108 = por %p106, %p107
      %p109 = scmp.ne.s32.totalorder %s97, %s98
      %p110 = scmp.eq.s32.totalorder %s25, 1
      %p111 = por %p109, %p110
      %p113 = scmp.ne.s32.totalorder %s98, %s112
      %p114 = scmp.eq.s32.totalorder %s25, 0
      %p115 = por %p113, %p114
      %s117 = sadd.s32 %s116, 1
      %p120 = scmp.eq.s32.totalorder %s19, 1
      %p121 = scmp.ne.s32.totalorder %s116, %s118
      %p122 = scmp.eq.s32.totalorder %s19, 0
      %p123 = por %p121, %p122
      %p124 = scmp.ne.s32.totalorder %s116, %s118
      %p125 = scmp.eq.s32.totalorder %s24, 1
      %p126 = por %p124, %p125
      %p127 = scmp.ne.s32.totalorder %s118, %s119
      %p128 = scmp.eq.s32.totalorder %s24, 0
      %p129 = por %p127, %p128
      %p130 = scmp.ne.s32.totalorder %s118, %s119
      %p131 = scmp.eq.s32.totalorder %s25, 1
      %p132 = por %p130, %p131
      %p134 = scmp.ne.s32.totalorder %s119, %s133
      %p135 = scmp.eq.s32.totalorder %s25, 0
      %p136 = por %p134, %p135
      %s138 = sadd.s32 %s137, 1
      %p141 = scmp.eq.s32.totalorder %s19, 1
      %p142 = scmp.ne.s32.totalorder %s137, %s139
      %p143 = scmp.eq.s32.totalorder %s19, 0
      %p144 = por %p142, %p143
      %p145 = scmp.ne.s32.totalorder %s137, %s139
      %p146 = scmp.eq.s32.totalorder %s24, 1
      %p147 = por %p145, %p146
      %p148 = scmp.ne.s32.totalorder %s139, %s140
      %p149 = scmp.eq.s32.totalorder %s24, 0
      %p150 = por %p148, %p149
      %p151 = scmp.ne.s32.totalorder %s139, %s140
      %p152 = scmp.eq.s32.totalorder %s25, 1
      %p153 = por %p151, %p152
      %p155 = scmp.ne.s32.totalorder %s140, %s154
      %p156 = scmp.eq.s32.totalorder %s25, 0
      %p157 = por %p155, %p156
      %s159 = sadd.s32 %s158, 1
      %p162 = scmp.eq.s32.totalorder %s19, 1
      %p163 = scmp.ne.s32.totalorder %s158, %s160
      %p164 = scmp.eq.s32.totalorder %s19, 0
      %p165 = por %p163, %p164
      %p166 = scmp.ne.s32.totalorder %s158, %s160
      %p167 = scmp.eq.s32.totalorder %s24, 1
      %p168 = por %p166, %p167
      %p169 = scmp.ne.s32.totalorder %s160, %s161
      %p170 = scmp.eq.s32.totalorder %s24, 0
      %p171 = por %p169, %p170
      %p172 = scmp.ne.s32.totalorder %s160, %s161
      %p173 = scmp.eq.s32.totalorder %s25, 1
      %p174 = por %p172, %p173
      %p176 = scmp.ne.s32.totalorder %s161, %s175
      %p177 = scmp.eq.s32.totalorder %s25, 0
      %p178 = por %p176, %p177
      %s179 = ssub.s32 %s19, %s26
      %p180 = scmp.eq.s32.totalorder %s179, 0
      %s182 = sadd.s32 %s181, 1
      %s183 = scalar_select %p180, %s181, %s182
      %p186 = pneg %p180
      %p187 = scmp.eq.s32.totalorder %s19, 1
      %p188 = por %p186, %p187
      %p189 = scmp.ne.s32.totalorder %s181, %s184
      %p190 = scmp.eq.s32.totalorder %s19, 0
      %p191 = por %p189, %p190
      %p192 = scmp.ne.s32.totalorder %s181, %s184
      %p193 = scmp.eq.s32.totalorder %s24, 1
      %p194 = por %p192, %p193
      %p195 = scmp.ne.s32.totalorder %s184, %s185
      %p196 = scmp.eq.s32.totalorder %s24, 0
      %p197 = por %p195, %p196
      %p198 = scmp.ne.s32.totalorder %s184, %s185
      %p199 = scmp.eq.s32.totalorder %s25, 1
      %p200 = por %p198, %p199
      %p202 = scmp.ne.s32.totalorder %s185, %s201
      %p203 = scmp.eq.s32.totalorder %s25, 0
      %p204 = por %p202, %p203
      %p205 = scmp.le.s32.totalorder 1, %s19
      %p206 = scmp.lt.s32.totalorder %s19, 3
      %p207 = pnand %p205, %p206
      %p208 = pneg %p207
      // Predicated region
      $region9: #{tpu_custom_call.1} parent=5 // pred_check
        _
      $region10: #{tpu_custom_call.1} parent=5 // pred_check_branch
        %210 = sbr.rel (%p207) target = $region12
      $region11: #{tpu_custom_call.1} parent=5 // pred_region
        %s211 = ssub.s32 %s19, 1
        // Predicated region
        $region13: #{tpu_custom_call.1} parent=11 // pred_check
          %p212 = pneg %p66
        $region14: #{tpu_custom_call.1} parent=11 // pred_check_branch
          %214 = sbr.rel (%p212) target = $region16
        $region15: #{tpu_custom_call.1} parent=11 // pred_region
          _
        $region16: #{tpu_custom_call.1} parent=11 // pred_fallthru
          _
        // Predicated region
        $region17: #{tpu_custom_call.1} parent=11 // pred_check
          %p215 = pneg %p87
        $region18: #{tpu_custom_call.1} parent=11 // pred_check_branch
          %217 = sbr.rel (%p215) target = $region20
        $region19: #{tpu_custom_call.1} parent=11 // pred_region
          _
        $region20: #{tpu_custom_call.1} parent=11 // pred_fallthru
          _
        // Predicated region
        $region21: #{tpu_custom_call.1} parent=11 // pred_check
          %p218 = pneg %p108
        $region22: #{tpu_custom_call.1} parent=11 // pred_check_branch
          %220 = sbr.rel (%p218) target = $region24
        $region23: #{tpu_custom_call.1} parent=11 // pred_region
          _
        $region24: #{tpu_custom_call.1} parent=11 // pred_fallthru
          _
        // Predicated region
        $region25: #{tpu_custom_call.1} parent=11 // pred_check
          %p221 = pneg %p129
        $region26: #{tpu_custom_call.1} parent=11 // pred_check_branch
          %223 = sbr.rel (%p221) target = $region28
        $region27: #{tpu_custom_call.1} parent=11 // pred_region
          _
        $region28: #{tpu_custom_call.1} parent=11 // pred_fallthru
          _
        // Predicated region
        $region29: #{tpu_custom_call.1} parent=11 // pred_check
          %p224 = pneg %p150
        $region30: #{tpu_custom_call.1} parent=11 // pred_check_branch
          %226 = sbr.rel (%p224) target = $region32
        $region31: #{tpu_custom_call.1} parent=11 // pred_region
          _
        $region32: #{tpu_custom_call.1} parent=11 // pred_fallthru
          _
        // Predicated region
        $region33: #{tpu_custom_call.1} parent=11 // pred_check
          %p227 = pneg %p171
        $region34: #{tpu_custom_call.1} parent=11 // pred_check_branch
          %229 = sbr.rel (%p227) target = $region36
        $region35: #{tpu_custom_call.1} parent=11 // pred_region
          _
        $region36: #{tpu_custom_call.1} parent=11 // pred_fallthru
          _
      $region12: #{tpu_custom_call.1} parent=5 // pred_fallthru
        _
      %p230 = scmp.lt.s32.totalorder %s19, 2
      // Predicated region
      $region37: #{tpu_custom_call.1} parent=5 // pred_check
        %p231 = pneg %p230
      $region38: #{tpu_custom_call.1} parent=5 // pred_check_branch
        %233 = sbr.rel (%p231) target = $region40
      $region39: #{tpu_custom_call.1} parent=5 // pred_region
        // Predicated region
        $region41: #{tpu_custom_call.1} parent=39 // pred_check
          %p234 = pneg %p39
        $region42: #{tpu_custom_call.1} parent=39 // pred_check_branch
          %236 = sbr.rel (%p234) target = $region44
        $region43: #{tpu_custom_call.1} parent=39 // pred_region
          %s237 = sand.u32 %s29, 1
          %s238 = scalar_lea.sflag [#allocation3], %s237
          %s239 = sand.u32 %s29, 1
          %s240 = smul.addr %s239, 64
          %s241 = scalar_lea.vmem [#allocation2], %s240
          %s242 = smul.u32 4, %s19
          %244 = vsyncadd %s238, 0
          %s245 = smul.addr %s242, 8
          %s246 = scalar_lea.hbm %s0, %s245
          %s247 = sshll.u32 %s246, 4
          %s248 = int_to_ptr.hbm [resolvable:$true] %s247
          %s249 = sshll.u32 %s241, 4
          %s250 = int_to_ptr.vmem [resolvable:$true] %s249
          %255 = dma.hbm_to_vmem [thread:$0]  %s248, 1024, %s250, %s238, 1024, 512, 32
        $region44: #{tpu_custom_call.1} parent=39 // pred_fallthru
          _
      $region40: #{tpu_custom_call.1} parent=5 // pred_fallthru
        _
      %p256 = scmp.le.s32.totalorder 1, %s19
      %p257 = scmp.lt.s32.totalorder %s19, 3
      %p258 = pnand %p256, %p257
      %p259 = pneg %p258
      // Predicated region
      $region45: #{tpu_custom_call.1} parent=5 // pred_check
        _
      $region46: #{tpu_custom_call.1} parent=5 // pred_check_branch
        %261 = sbr.rel (%p258) target = $region48
      $region47: #{tpu_custom_call.1} parent=5 // pred_region
        %s262 = ssub.s32 %s19, 1
        %s263 = sand.u32 %s32, 1
        %s264 = scalar_lea.sflag [#allocation3], %s263
        %s265 = sand.u32 %s32, 1
        %s266 = smul.addr %s265, 64
        %s267 = scalar_lea.vmem [#allocation2], %s266
        // Predicated region
        $region49: #{tpu_custom_call.1} parent=47 // pred_check
          %p268 = pneg %p45
        $region50: #{tpu_custom_call.1} parent=47 // pred_check_branch
          %270 = sbr.rel (%p268) target = $region52
        $region51: #{tpu_custom_call.1} parent=47 // pred_region
          %272 = dma.done %s264, 1024
        $region52: #{tpu_custom_call.1} parent=47 // pred_fallthru
          _
        %s273 = sand.u32 %s32, 1
        %s274 = scalar_lea.sflag [#allocation3], %s273
        %s275 = sand.u32 %s32, 1
        %s276 = smul.addr %s275, 64
        %s277 = scalar_lea.vmem [#allocation2], %s276
        %p278 = pneg %p45
        %p279 = pneg %p42
        %p280 = pneg %p66
        %p281 = pneg %p63
        %p282 = pneg %p87
        %p283 = pneg %p84
        %p284 = pneg %p108
        %p285 = pneg %p105
        %p286 = pneg %p129
        %p287 = pneg %p126
        %p288 = pneg %p150
        %p289 = pneg %p147
        %p290 = pneg %p171
        %p291 = pneg %p168
        %p292 = pneg %p197
        %p293 = pneg %p194
        %s294 = sand.u32 %s184, 1
        %s295 = scalar_lea.sflag [#allocation4], %s294
        %s296 = sand.u32 %s184, 1
        %s297 = smul.addr %s296, 32
        %s298 = scalar_lea.vmem [#allocation5], %s297
        %s299 = smul.u32 4, %s24
        %s300 = smul.u32 4, %s24
        %v302 = vld [vmem:[%s267] sm:$0xff]
        %v303 = vld [vmem:[%s267 + $0x8] sm:$0xff]
        %v304 = vld [vmem:[%s267 + $0x10] sm:$0xff]
        %v305 = vld [vmem:[%s267 + $0x18] sm:$0xff]
        %v306 = vld [vmem:[%s267 + $0x20] sm:$0xff]
        %v307 = vld [vmem:[%s267 + $0x28] sm:$0xff]
        %v308 = vld [vmem:[%s267 + $0x30] sm:$0xff]
        %v309 = vld [vmem:[%s267 + $0x38] sm:$0xff]
        %v310 = vld [vmem:[%s1] sm:$0xf]
        %v311 = vld [vmem:[%s1 + $0x4] sm:$0xf]
        %v312 = vld [vmem:[%s1 + $0x8] sm:$0xf]
        %v313 = vld [vmem:[%s1 + $0xc] sm:$0xf]
        %v314 = vpack.c.bf16 %v306, %v302
        %v315 = vpack.c.bf16 %v307, %v303
        %v316 = vpack.c.bf16 %v308, %v304
        %v317 = vpack.c.bf16 %v309, %v305
        %v318 = vld [vmem:[%s4] sm:$0xff]
        %v319 = vld [vmem:[%s4 + $0x8] sm:$0xff]
        %v320 = vld [vmem:[%s4 + $0x10] sm:$0xff]
        %v321 = vld [vmem:[%s4 + $0x18] sm:$0xff]
        %323 = vset.pattern.permute.xlu0 0
        %324 = vperm.xlu0 %323, %v318
        %v325 = vpop.permute.xlu0 %324
        %328 = vset.pattern.permute.xlu0 0
        %329 = vperm.xlu0 %328, %v319
        %v330 = vpop.permute.xlu0 %329
        %333 = vset.pattern.permute.xlu0 0
        %334 = vperm.xlu0 %333, %v320
        %v335 = vpop.permute.xlu0 %334
        %338 = vset.pattern.permute.xlu0 0
        %339 = vperm.xlu0 %338, %v321
        %v340 = vpop.permute.xlu0 %339
        %v346 = vunpack.c.l.b16 %v310
        %v347 = vunpack.c.l.b16 %v311
        %v348 = vunpack.c.l.b16 %v312
        %v349 = vunpack.c.l.b16 %v313
        %v350 = vpack.c.b16 %v347, %v346
        %v351 = vpack.c.b16 %v349, %v348
        %vm352 = vcmask 130048
        %v354 = vsel %vm352, %v350, 0
        %v357 = vsel %vm352, %v351, 0
        %359 = vmatpush.bf16.msra.mxu0 0
        %360 = vmatpush.bf16.msra.mxu0 0
        %361 = vmatpush.bf16.msra.mxu0 0
        %362 = vmatpush.bf16.msra.mxu0 0
        %363 = vmatpush.bf16.msra.mxu0 0
        %364 = vmatpush.bf16.msra.mxu0 0
        %365 = vmatpush.bf16.msra.mxu0 0
        %366 = vmatpush.bf16.msra.mxu0 %v314
        %367 = vmatmul.bf16.gmra.mxu0 %v354
        %v368 = vpop.f32.mrf.mxu0
        %v369 = vadd.f32 %v325, %v368
        %v370 = vpop.f32.mrf.mxu0
        %v371 = vadd.f32 %v330, %v370
        %372 = vmatmul.bf16.gmra.mxu0 %v357
        %v373 = vpop.f32.mrf.mxu0
        %v374 = vadd.f32 %v335, %v373
        %v375 = vpop.f32.mrf.mxu0
        %v376 = vadd.f32 %v340, %v375
        %377 = vdwg.mxu0
        %378 = vmatpush.bf16.msra.mxu0 0
        %379 = vmatpush.bf16.msra.mxu0 0
        %380 = vmatpush.bf16.msra.mxu0 0
        %381 = vmatpush.bf16.msra.mxu0 0
        %382 = vmatpush.bf16.msra.mxu0 0
        %383 = vmatpush.bf16.msra.mxu0 0
        %384 = vmatpush.bf16.msra.mxu0 0
        %385 = vmatpush.bf16.msra.mxu0 %v315
        %386 = vmatmul.bf16.gmra.mxu0 %v354
        %v387 = vpop.f32.mrf.mxu0
        %v388 = vadd.f32 %v325, %v387
        %v389 = vpop.f32.mrf.mxu0
        %v390 = vadd.f32 %v330, %v389
        %391 = vmatmul.bf16.gmra.mxu0 %v357
        %v392 = vpop.f32.mrf.mxu0
        %v393 = vadd.f32 %v335, %v392
        %v394 = vpop.f32.mrf.mxu0
        %v395 = vadd.f32 %v340, %v394
        %396 = vdwg.mxu0
        %397 = vmatpush.bf16.msra.mxu0 0
        %398 = vmatpush.bf16.msra.mxu0 0
        %399 = vmatpush.bf16.msra.mxu0 0
        %400 = vmatpush.bf16.msra.mxu0 0
        %401 = vmatpush.bf16.msra.mxu0 0
        %402 = vmatpush.bf16.msra.mxu0 0
        %403 = vmatpush.bf16.msra.mxu0 0
        %404 = vmatpush.bf16.msra.mxu0 %v316
        %405 = vmatmul.bf16.gmra.mxu0 %v354
        %v406 = vpop.f32.mrf.mxu0
        %v407 = vadd.f32 %v325, %v406
        %v408 = vpop.f32.mrf.mxu0
        %v409 = vadd.f32 %v330, %v408
        %410 = vmatmul.bf16.gmra.mxu0 %v357
        %v411 = vpop.f32.mrf.mxu0
        %v412 = vadd.f32 %v335, %v411
        %v413 = vpop.f32.mrf.mxu0
        %v414 = vadd.f32 %v340, %v413
        %415 = vdwg.mxu0
        %416 = vmatpush.bf16.msra.mxu0 0
        %417 = vmatpush.bf16.msra.mxu0 0
        %418 = vmatpush.bf16.msra.mxu0 0
        %419 = vmatpush.bf16.msra.mxu0 0
        %420 = vmatpush.bf16.msra.mxu0 0
        %421 = vmatpush.bf16.msra.mxu0 0
        %422 = vmatpush.bf16.msra.mxu0 0
        %423 = vmatpush.bf16.msra.mxu0 %v317
        %424 = vmatmul.bf16.gmra.mxu0 %v354
        %v425 = vpop.f32.mrf.mxu0
        %v426 = vadd.f32 %v325, %v425
        %v427 = vpop.f32.mrf.mxu0
        %v428 = vadd.f32 %v330, %v427
        %429 = vmatmul.bf16.gmra.mxu0 %v357
        %v430 = vpop.f32.mrf.mxu0
        %v431 = vadd.f32 %v335, %v430
        %v432 = vpop.f32.mrf.mxu0
        %v433 = vadd.f32 %v340, %v432
        %434 = vdwg.mxu0
        %v435 = vpack.c.bf16 %v371, %v369
        %v436 = vpack.c.bf16 %v390, %v388
        %v437 = vpack.c.bf16 %v409, %v407
        %v438 = vpack.c.bf16 %v428, %v426
        %v439 = vpack.c.bf16 %v376, %v374
        %v440 = vpack.c.bf16 %v395, %v393
        %v441 = vpack.c.bf16 %v414, %v412
        %v442 = vpack.c.bf16 %v433, %v431
        %v443 = vunpack.c.l.bf16 %v435
        %v444 = vunpack.c.l.bf16 %v436
        %v445 = vunpack.c.l.bf16 %v437
        %v446 = vunpack.c.l.bf16 %v438
        %v447 = vunpack.c.h.bf16 %v435
        %v448 = vunpack.c.h.bf16 %v436
        %v449 = vunpack.c.h.bf16 %v437
        %v450 = vunpack.c.h.bf16 %v438
        %v451 = vunpack.c.l.bf16 %v439
        %v452 = vunpack.c.l.bf16 %v440
        %v453 = vunpack.c.l.bf16 %v441
        %v454 = vunpack.c.l.bf16 %v442
        %v455 = vunpack.c.h.bf16 %v439
        %v456 = vunpack.c.h.bf16 %v440
        %v457 = vunpack.c.h.bf16 %v441
        %v458 = vunpack.c.h.bf16 %v442
        %v459 = vtanh.pop %v443
        %v460 = vtanh.pop %v444
        %v461 = vtanh.pop %v445
        %v462 = vtanh.pop %v446
        %v463 = vtanh.pop %v447
        %v464 = vtanh.pop %v448
        %v465 = vtanh.pop %v449
        %v466 = vtanh.pop %v450
        %v467 = vtanh.pop %v451
        %v468 = vtanh.pop %v452
        %v469 = vtanh.pop %v453
        %v470 = vtanh.pop %v454
        %v471 = vtanh.pop %v455
        %v472 = vtanh.pop %v456
        %v473 = vtanh.pop %v457
        %v474 = vtanh.pop %v458
        %v475 = vpack.c.bf16 %v463, %v459
        %v476 = vpack.c.bf16 %v464, %v460
        %v477 = vpack.c.bf16 %v465, %v461
        %v478 = vpack.c.bf16 %v466, %v462
        %v479 = vpack.c.bf16 %v471, %v467
        %v480 = vpack.c.bf16 %v472, %v468
        %v481 = vpack.c.bf16 %v473, %v469
        %v482 = vpack.c.bf16 %v474, %v470
        %v483 = vld [vmem:[%s2] sm:$0xf]
        %v484 = vld [vmem:[%s2 + $0x4] sm:$0xf]
        %v485 = vld [vmem:[%s2 + $0x8] sm:$0xf]
        %v486 = vld [vmem:[%s2 + $0xc] sm:$0xf]
        %v487 = vld [vmem:[%s5] sm:$0xff]
        %v488 = vld [vmem:[%s5 + $0x8] sm:$0xff]
        %v489 = vld [vmem:[%s5 + $0x10] sm:$0xff]
        %v490 = vld [vmem:[%s5 + $0x18] sm:$0xff]
        %492 = vset.pattern.permute.xlu0 0
        %493 = vperm.xlu0 %492, %v487
        %v494 = vpop.permute.xlu0 %493
        %497 = vset.pattern.permute.xlu0 0
        %498 = vperm.xlu0 %497, %v488
        %v499 = vpop.permute.xlu0 %498
        %502 = vset.pattern.permute.xlu0 0
        %503 = vperm.xlu0 %502, %v489
        %v504 = vpop.permute.xlu0 %503
        %507 = vset.pattern.permute.xlu0 0
        %508 = vperm.xlu0 %507, %v490
        %v509 = vpop.permute.xlu0 %508
        %v515 = vunpack.c.l.b16 %v483
        %v516 = vunpack.c.l.b16 %v484
        %v517 = vunpack.c.l.b16 %v485
        %v518 = vunpack.c.l.b16 %v486
        %v519 = vpack.c.b16 %v516, %v515
        %v520 = vpack.c.b16 %v518, %v517
        %vm521 = vcmask 261120
        %v523 = vsel %vm521, %v519, 0
        %v526 = vsel %vm521, %v520, 0
        %528 = vmatpush.bf16.msra.mxu0 0
        %529 = vmatpush.bf16.msra.mxu0 0
        %530 = vmatpush.bf16.msra.mxu0 0
        %531 = vmatpush.bf16.msra.mxu0 0
        %532 = vmatpush.bf16.msra.mxu0 0
        %533 = vmatpush.bf16.msra.mxu0 0
        %534 = vmatpush.bf16.msra.mxu0 %v479
        %535 = vmatpush.bf16.msra.mxu0 %v475
        %536 = vmatmul.bf16.gmra.mxu0 %v523
        %v537 = vpop.f32.mrf.mxu0
        %v538 = vadd.f32 %v494, %v537
        %v539 = vpop.f32.mrf.mxu0
        %v540 = vadd.f32 %v499, %v539
        %541 = vmatmul.bf16.gmra.mxu0 %v526
        %v542 = vpop.f32.mrf.mxu0
        %v543 = vadd.f32 %v504, %v542
        %v544 = vpop.f32.mrf.mxu0
        %v545 = vadd.f32 %v509, %v544
        %546 = vdwg.mxu0
        %547 = vmatpush.bf16.msra.mxu0 0
        %548 = vmatpush.bf16.msra.mxu0 0
        %549 = vmatpush.bf16.msra.mxu0 0
        %550 = vmatpush.bf16.msra.mxu0 0
        %551 = vmatpush.bf16.msra.mxu0 0
        %552 = vmatpush.bf16.msra.mxu0 0
        %553 = vmatpush.bf16.msra.mxu0 %v480
        %554 = vmatpush.bf16.msra.mxu0 %v476
        %555 = vmatmul.bf16.gmra.mxu0 %v523
        %v556 = vpop.f32.mrf.mxu0
        %v557 = vadd.f32 %v494, %v556
        %v558 = vpop.f32.mrf.mxu0
        %v559 = vadd.f32 %v499, %v558
        %560 = vmatmul.bf16.gmra.mxu0 %v526
        %v561 = vpop.f32.mrf.mxu0
        %v562 = vadd.f32 %v504, %v561
        %v563 = vpop.f32.mrf.mxu0
        %v564 = vadd.f32 %v509, %v563
        %565 = vdwg.mxu0
        %566 = vmatpush.bf16.msra.mxu0 0
        %567 = vmatpush.bf16.msra.mxu0 0
        %568 = vmatpush.bf16.msra.mxu0 0
        %569 = vmatpush.bf16.msra.mxu0 0
        %570 = vmatpush.bf16.msra.mxu0 0
        %571 = vmatpush.bf16.msra.mxu0 0
        %572 = vmatpush.bf16.msra.mxu0 %v481
        %573 = vmatpush.bf16.msra.mxu0 %v477
        %574 = vmatmul.bf16.gmra.mxu0 %v523
        %v575 = vpop.f32.mrf.mxu0
        %v576 = vadd.f32 %v494, %v575
        %v577 = vpop.f32.mrf.mxu0
        %v578 = vadd.f32 %v499, %v577
        %579 = vmatmul.bf16.gmra.mxu0 %v526
        %v580 = vpop.f32.mrf.mxu0
        %v581 = vadd.f32 %v504, %v580
        %v582 = vpop.f32.mrf.mxu0
        %v583 = vadd.f32 %v509, %v582
        %584 = vdwg.mxu0
        %585 = vmatpush.bf16.msra.mxu0 0
        %586 = vmatpush.bf16.msra.mxu0 0
        %587 = vmatpush.bf16.msra.mxu0 0
        %588 = vmatpush.bf16.msra.mxu0 0
        %589 = vmatpush.bf16.msra.mxu0 0
        %590 = vmatpush.bf16.msra.mxu0 0
        %591 = vmatpush.bf16.msra.mxu0 %v482
        %592 = vmatpush.bf16.msra.mxu0 %v478
        %593 = vmatmul.bf16.gmra.mxu0 %v523
        %v594 = vpop.f32.mrf.mxu0
        %v595 = vadd.f32 %v494, %v594
        %v596 = vpop.f32.mrf.mxu0
        %v597 = vadd.f32 %v499, %v596
        %598 = vmatmul.bf16.gmra.mxu0 %v526
        %v599 = vpop.f32.mrf.mxu0
        %v600 = vadd.f32 %v504, %v599
        %v601 = vpop.f32.mrf.mxu0
        %v602 = vadd.f32 %v509, %v601
        %603 = vdwg.mxu0
        %v604 = vpack.c.bf16 %v540, %v538
        %v605 = vpack.c.bf16 %v559, %v557
        %v606 = vpack.c.bf16 %v578, %v576
        %v607 = vpack.c.bf16 %v597, %v595
        %v608 = vpack.c.bf16 %v545, %v543
        %v609 = vpack.c.bf16 %v564, %v562
        %v610 = vpack.c.bf16 %v583, %v581
        %v611 = vpack.c.bf16 %v602, %v600
        %v612 = vunpack.c.l.bf16 %v604
        %v613 = vunpack.c.l.bf16 %v605
        %v614 = vunpack.c.l.bf16 %v606
        %v615 = vunpack.c.l.bf16 %v607
        %v616 = vunpack.c.h.bf16 %v604
        %v617 = vunpack.c.h.bf16 %v605
        %v618 = vunpack.c.h.bf16 %v606
        %v619 = vunpack.c.h.bf16 %v607
        %v620 = vunpack.c.l.bf16 %v608
        %v621 = vunpack.c.l.bf16 %v609
        %v622 = vunpack.c.l.bf16 %v610
        %v623 = vunpack.c.l.bf16 %v611
        %v624 = vunpack.c.h.bf16 %v608
        %v625 = vunpack.c.h.bf16 %v609
        %v626 = vunpack.c.h.bf16 %v610
        %v627 = vunpack.c.h.bf16 %v611
        %v628 = vtanh.pop %v612
        %v629 = vtanh.pop %v613
        %v630 = vtanh.pop %v614
        %v631 = vtanh.pop %v615
        %v632 = vtanh.pop %v616
        %v633 = vtanh.pop %v617
        %v634 = vtanh.pop %v618
        %v635 = vtanh.pop %v619
        %v636 = vtanh.pop %v620
        %v637 = vtanh.pop %v621
        %v638 = vtanh.pop %v622
        %v639 = vtanh.pop %v623
        %v640 = vtanh.pop %v624
        %v641 = vtanh.pop %v625
        %v642 = vtanh.pop %v626
        %v643 = vtanh.pop %v627
        %v644 = vpack.c.bf16 %v632, %v628
        %v645 = vpack.c.bf16 %v633, %v629
        %v646 = vpack.c.bf16 %v634, %v630
        %v647 = vpack.c.bf16 %v635, %v631
        %v648 = vpack.c.bf16 %v640, %v636
        %v649 = vpack.c.bf16 %v641, %v637
        %v650 = vpack.c.bf16 %v642, %v638
        %v651 = vpack.c.bf16 %v643, %v639
        %v652 = vld [vmem:[%s3] sm:$0xf]
        %v653 = vld [vmem:[%s6] sm:$0xff]
        %655 = vset.pattern.permute.xlu0 0
        %656 = vperm.xlu0 %655, %v653
        %v657 = vpop.permute.xlu0 %656
        %v660 = vsel %vm521, %v652, 0
        %662 = vmatpush.bf16.msra.mxu0 0
        %663 = vmatpush.bf16.msra.mxu0 0
        %664 = vmatpush.bf16.msra.mxu0 0
        %665 = vmatpush.bf16.msra.mxu0 0
        %666 = vmatpush.bf16.msra.mxu0 0
        %667 = vmatpush.bf16.msra.mxu0 0
        %668 = vmatpush.bf16.msra.mxu0 %v648
        %669 = vmatpush.bf16.msra.mxu0 %v644
        %670 = vmatmul.bf16.gmra.mxu0 %v660
        %v671 = vpop.f32.mrf.mxu0
        %v672 = vadd.f32 %v657, %v671
        %v673 = vpop.f32.mrf.mxu0
        %674 = vdwg.mxu0
        %675 = vmatpush.bf16.msra.mxu0 0
        %676 = vmatpush.bf16.msra.mxu0 0
        %677 = vmatpush.bf16.msra.mxu0 0
        %678 = vmatpush.bf16.msra.mxu0 0
        %679 = vmatpush.bf16.msra.mxu0 0
        %680 = vmatpush.bf16.msra.mxu0 0
        %681 = vmatpush.bf16.msra.mxu0 %v649
        %682 = vmatpush.bf16.msra.mxu0 %v645
        %683 = vmatmul.bf16.gmra.mxu0 %v660
        %v684 = vpop.f32.mrf.mxu0
        %v685 = vadd.f32 %v657, %v684
        %v686 = vpop.f32.mrf.mxu0
        %687 = vdwg.mxu0
        %688 = vmatpush.bf16.msra.mxu0 0
        %689 = vmatpush.bf16.msra.mxu0 0
        %690 = vmatpush.bf16.msra.mxu0 0
        %691 = vmatpush.bf16.msra.mxu0 0
        %692 = vmatpush.bf16.msra.mxu0 0
        %693 = vmatpush.bf16.msra.mxu0 0
        %694 = vmatpush.bf16.msra.mxu0 %v650
        %695 = vmatpush.bf16.msra.mxu0 %v646
        %696 = vmatmul.bf16.gmra.mxu0 %v660
        %v697 = vpop.f32.mrf.mxu0
        %v698 = vadd.f32 %v657, %v697
        %v699 = vpop.f32.mrf.mxu0
        %700 = vdwg.mxu0
        %701 = vmatpush.bf16.msra.mxu0 0
        %702 = vmatpush.bf16.msra.mxu0 0
        %703 = vmatpush.bf16.msra.mxu0 0
        %704 = vmatpush.bf16.msra.mxu0 0
        %705 = vmatpush.bf16.msra.mxu0 0
        %706 = vmatpush.bf16.msra.mxu0 0
        %707 = vmatpush.bf16.msra.mxu0 %v651
        %708 = vmatpush.bf16.msra.mxu0 %v647
        %709 = vmatmul.bf16.gmra.mxu0 %v660
        %v710 = vpop.f32.mrf.mxu0
        %v711 = vadd.f32 %v657, %v710
        %v712 = vpop.f32.mrf.mxu0
        %713 = vdwg.mxu0
        %714 = vst [vmem:[%s298] sm:$0xff] %v672
        %715 = vst [vmem:[%s298 + $0x8] sm:$0xff] %v685
        %716 = vst [vmem:[%s298 + $0x10] sm:$0xff] %v698
        %717 = vst [vmem:[%s298 + $0x18] sm:$0xff] %v711
        %s718 = sand.u32 %s184, 1
        %s719 = scalar_lea.sflag [#allocation4], %s718
        %s720 = sand.u32 %s184, 1
        %s721 = smul.addr %s720, 32
        %s722 = scalar_lea.vmem [#allocation5], %s721
        // Predicated region
        $region53: #{tpu_custom_call.1} parent=47 // pred_check
          %p723 = pneg %p194
        $region54: #{tpu_custom_call.1} parent=47 // pred_check_branch
          %725 = sbr.rel (%p723) target = $region56
        $region55: #{tpu_custom_call.1} parent=47 // pred_region
          %s726 = smul.u32 4, %s24
          %728 = vsyncadd %s719, 0
          %s729 = smul.addr %s726, 8
          %s730 = scalar_lea.hbm %s7, %s729
          %s732 = sshll.u32 %s722, 4
          %s733 = int_to_ptr.vmem [resolvable:$true] %s732
          %s734 = sshll.u32 %s730, 4
          %s735 = int_to_ptr.hbm [resolvable:$true] %s734
          %737 = dma.vmem_to_hbm [thread:$0]  %s733, 512, %s735, %s719
        $region56: #{tpu_custom_call.1} parent=47 // pred_fallthru
          _
      $region48: #{tpu_custom_call.1} parent=5 // pred_fallthru
        _
      %p738 = scmp.le.s32.totalorder 2, %s19
      // Predicated region
      $region57: #{tpu_custom_call.1} parent=5 // pred_check
        %p739 = pneg %p738
      $region58: #{tpu_custom_call.1} parent=5 // pred_check_branch
        %741 = sbr.rel (%p739) target = $region60
      $region59: #{tpu_custom_call.1} parent=5 // pred_region
        %s742 = ssub.s32 %s19, 2
        // Predicated region
        $region61: #{tpu_custom_call.1} parent=59 // pred_check
          %p743 = pneg %p200
        $region62: #{tpu_custom_call.1} parent=59 // pred_check_branch
          %745 = sbr.rel (%p743) target = $region64
        $region63: #{tpu_custom_call.1} parent=59 // pred_region
          %s746 = sand.u32 %s185, 1
          %s747 = scalar_lea.sflag [#allocation4], %s746
          %s748 = sand.u32 %s185, 1
          %s749 = smul.addr %s748, 32
          %s750 = scalar_lea.vmem [#allocation5], %s749
          %752 = dma.done %s747, 512
        $region64: #{tpu_custom_call.1} parent=59 // pred_fallthru
          _
      $region60: #{tpu_custom_call.1} parent=5 // pred_fallthru
        _
    $region6: #{tpu_custom_call.1} parent=1 // loop_footer
      %s23 = sadd.s32 1, %s19
    $region7: #{tpu_custom_call.1} parent=1 // loop_footer_branch
      %18 = sbr.rel target = $region3
    $region8: #{tpu_custom_call.1} parent=1 // loop_exit
      _
    %753 = vsyncpa [#allocation3], 1
    %s754 = scalar_lea.sflag [#allocation3], 1
    %755 = vsyncpa %s754, 1
    %756 = vsyncpa [#allocation4], 1
    %s757 = scalar_lea.sflag [#allocation4], 1
    %758 = vsyncpa %s757, 1

</llo_original>
